<compile_context>
chip_gen: v6e
topology: v6e:2x2x1
jax: 0.10.0
libtpu: 0.0.40
codegen_flags: <defaults>
</compile_context>

<pallas_src>
import functools

import jax
import jax.numpy as jnp
from jax import lax
from jax.experimental import pallas as pl
from jax.experimental.pallas import tpu as pltpu

_EPS = 1e-5


# --------------------------------------------------------------------------------------
# Pass 1: column degrees (+ optional bf16 copy of A).  Grid = (B, row tiles); the row
# axis is a reduction ("arbitrary"): the degree accumulator / d12 block stays resident.
# --------------------------------------------------------------------------------------
def _degree_kernel(a_ref, *refs, n_rows, mask_rows, emit_cast):
    if emit_cast:
        d12_ref, a_out_ref, acc_ref = refs
    else:
        d12_ref, acc_ref = refs
        a_out_ref = None

    i = pl.program_id(1)

    @pl.when(i == 0)
    def _():
        acc_ref[...] = jnp.zeros_like(acc_ref)

    a = a_ref[0].astype(jnp.float32)                              # (TM, N)
    if emit_cast:
        # Fold the f32 -> bf16 downcast of A into this pass so total HBM traffic does
        # not grow; pass 2 then reads half the A bytes.
        a_out_ref[0] = a_ref[0].astype(a_out_ref.dtype)

    if mask_rows:                                                 # masked cdiv last tile
        tm = a.shape[0]
        rows = i * tm + lax.broadcasted_iota(jnp.int32, (tm, 1), 0)
        a = jnp.where(rows < n_rows, a, 0.0)
    acc_ref[...] += jnp.sum(a, axis=0, keepdims=True)             # partial column sums

    @pl.when(i == pl.num_programs(1) - 1)
    def _():
        cs = acc_ref[...] + _EPS                                  # (1, N), lane-dense
        # Row 0: (deg+eps)^-1/2, row 1: (deg+eps)^-1 — kept lane-dense end to end.
        d12_ref[0] = jnp.concatenate([lax.rsqrt(cs), 1.0 / cs], axis=0)


# --------------------------------------------------------------------------------------
# Pass 2: per row tile  Z = A_tile @ Ys  (single big MXU matmul), then
#         out = [Z0 | d1*Z1 | d2*Z2 | 0-pad] @ W.
# Ys is precomputed in the wrapper, so there is no cross-iteration state and both grid
# axes are "parallel".
# --------------------------------------------------------------------------------------
def _agg_kernel(a_ref, ys_ref, d_ref, w_ref, o_ref, *, feat):
    k3 = ys_ref.shape[-1]

    a = a_ref[0].astype(jnp.float32)                              # bf16 stream -> f32 (VPU)
    z = jnp.dot(a, ys_ref[0], preferred_element_type=jnp.float32)  # (TM, K3) on the MXU

    d = d_ref[0]                                                  # (TM, 2): [d1 | d2]
    d1 = d[:, 0:1]
    d2 = d[:, 1:2]
    col = lax.broadcasted_iota(jnp.int32, (1, k3), 1)
    # H = [Z0, d1*Z1, d2*Z2, 0-pad] as one VPU select — no slicing / transposes.
    hscale = jnp.where(col < feat, 1.0, jnp.where(col < 2 * feat, d1, d2))
    h = z * hscale

    o_ref[0] = jnp.dot(h, w_ref[...], preferred_element_type=jnp.float32
                       ).astype(o_ref.dtype)


# --------------------------------------------------------------------------------------
# Sizing helpers.
# --------------------------------------------------------------------------------------
def _round_up(x, m):
    return (x + m - 1) // m * m


def _vmem_capacity_bytes():
    """Physical per-core VMEM queried from the device (v5e/v6e: 128 MiB, v7x: 64 MiB)."""
    try:
        info = pltpu.get_tpu_info()
        for attr in ("vmem_capacity_bytes", "vmem_size_bytes", "vmem_bytes"):
            val = getattr(info, attr, None)
            if val:
                return int(val)
    except Exception:
        pass
    return 64 * 1024 * 1024  # conservative (v7x-sized) default


def _choose_row_tile(n, k3, f_lanes, a_bytes, vmem_budget, requested):
    """Largest multiple-of-16 row tile whose pass-2 working set fits `vmem_budget`."""
    fixed = n * k3 * 4                      # Ys       (single-buffered, per batch)
    fixed += k3 * f_lanes * 4               # W        (single-buffered)
    per_row = 2 * n * a_bytes               # A tile   (double-buffered)
    per_row += 2 * 128 * 4                  # [d1|d2]  (lane-padded, double-buffered)
    per_row += 2 * f_lanes * 4              # out tile (double-buffered)
    avail = vmem_budget - fixed
    tm_max = (avail // per_row) // 16 * 16 if avail > 0 else 16
    tm = max(16, min(requested, max(tm_max, 16)) // 16 * 16)
    if tm >= n:
        tm = n                              # full row extent (always a legal block)
    return tm


def _maybe_single_buffered(shape, index_map, enable):
    """BlockSpec; per-batch-constant inputs are single-buffered when supported."""
    if enable:
        try:
            return pl.BlockSpec(shape, index_map, pipeline_mode=pl.Buffered(1))
        except Exception:
            pass
    return pl.BlockSpec(shape, index_map)


# --------------------------------------------------------------------------------------
# Public wrapper.
# --------------------------------------------------------------------------------------
def multi_graph_conv(A, X, w0, w1, w2, w, *, row_tile=512, stream_a_bf16=True):
    """MultiGraphConv forward (bias=False, bnorm=False, activation=None).

    A: [B,N,N]; X: [B,N,Din]; w0/w1/w2: [Din,F]; w: [3F,F].
    Returns (A, out) with A the caller's adjacency unchanged and out: [B,N,F] f32.
    stream_a_bf16: stream A through HBM as bf16 (exact for 0/1 adjacencies; set False
    for real-valued weighted graphs).
    """
    A_orig = A
    A = jnp.asarray(A)
    if not jnp.issubdtype(A.dtype, jnp.floating):
        A = A.astype(jnp.float32)
    X = jnp.asarray(X, jnp.float32)
    w0 = jnp.asarray(w0, jnp.float32)
    w1 = jnp.asarray(w1, jnp.float32)
    w2 = jnp.asarray(w2, jnp.float32)
    w = jnp.asarray(w, jnp.float32)

    B, N, _ = A.shape
    F = w0.shape[1]
    K3 = _round_up(3 * F, 128)              # lane-dense width for Ys / Z / H (zero-padded)
    F_lanes = _round_up(F, 128)

    in_bytes = A.dtype.itemsize
    a_stream_dtype = jnp.bfloat16 if (stream_a_bf16 and in_bytes > 2) else A.dtype
    emit_cast = a_stream_dtype != A.dtype
    a_bytes = jnp.dtype(a_stream_dtype).itemsize

    # Generation-aware VMEM budget: ~7/8 of physical, capped at 112 MiB
    # (v7x -> ~56 MiB, v6e/v5e -> ~112 MiB); 3/4 of that is given to pass-2 blocks.
    vmem_limit = min(_vmem_capacity_bytes() * 7 // 8, 112 * 1024 * 1024)
    tm = _choose_row_tile(N, K3, F_lanes, a_bytes, vmem_limit * 3 // 4, row_tile)
    n_tiles = pl.cdiv(N, tm)
    mask_rows = (N % tm) != 0               # masked cdiv grid, never a full-N fallback block

    # ---------------- Pass 1: degrees (+ bf16 copy of A) ----------------
    if emit_cast:
        p1_out_shape = (jax.ShapeDtypeStruct((B, 2, N), jnp.float32),
                        jax.ShapeDtypeStruct((B, N, N), a_stream_dtype))
        p1_out_specs = (pl.BlockSpec((1, 2, N), lambda b, i: (b, 0, 0)),
                        pl.BlockSpec((1, tm, N), lambda b, i: (b, i, 0)))
    else:
        p1_out_shape = jax.ShapeDtypeStruct((B, 2, N), jnp.float32)
        p1_out_specs = pl.BlockSpec((1, 2, N), lambda b, i: (b, 0, 0))

    p1_cost = pl.CostEstimate(
        flops=int(B * N * N),
        transcendentals=int(2 * B * N),
        bytes_accessed=int(B * N * N * (in_bytes + (a_bytes if emit_cast else 0)) + 8 * B * N))

    p1_res = pl.pallas_call(
        functools.partial(_degree_kernel, n_rows=N, mask_rows=mask_rows, emit_cast=emit_cast),
        out_shape=p1_out_shape,
        grid_spec=pltpu.PrefetchScalarGridSpec(
            num_scalar_prefetch=0,
            grid=(B, n_tiles),
            in_specs=[pl.BlockSpec((1, tm, N), lambda b, i: (b, i, 0))],
            out_specs=p1_out_specs,
            scratch_shapes=[pltpu.VMEM((1, N), jnp.float32)]),
        compiler_params=pltpu.CompilerParams(
            dimension_semantics=("parallel", "arbitrary"),
            vmem_limit_bytes=vmem_limit),
        cost_estimate=p1_cost,
    )(A)
    if emit_cast:
        d12, A_stream = p1_res
    else:
        d12, A_stream = p1_res, A

    # -------- Tiny XLA glue: O(B*N*(Din+F)) flops/bytes, negligible vs streaming A -----
    d1 = d12[:, 0, :]                                            # (B, N)  (deg+eps)^-1/2
    d2 = d12[:, 1, :]                                            # (B, N)  (deg+eps)^-1
    hi = lax.Precision.HIGHEST                                   # keep f32 accuracy; flops tiny
    y0 = jnp.einsum("bnd,df->bnf", X, w0, precision=hi)
    y1 = jnp.einsum("bnd,df->bnf", X, w1, precision=hi) * d1[..., None]
    y2 = jnp.einsum("bnd,df->bnf", X, w2, precision=hi)
    ys = jnp.concatenate(
        [y0, y1, y2, jnp.zeros((B, N, K3 - 3 * F), jnp.float32)], axis=-1)    # (B, N, K3)
    dcol = jnp.stack([d1, d2], axis=-1)                          # (B, N, 2) per-row scales
    w_pad = jnp.concatenate(
        [w, jnp.zeros((K3 - 3 * F, F), jnp.float32)], axis=0)                  # (K3, F)

    # ---------------- Pass 2: aggregation + output projection ----------------
    p2_cost = pl.CostEstimate(
        flops=int(2 * B * N * N * K3 + 2 * B * N * K3 * F),
        transcendentals=0,
        bytes_accessed=int(B * N * N * a_bytes + B * N * (K3 + F + 2) * 4 + K3 * F * 4))

    def _run_pass2(single_buffer_constants):
        in_specs = [
            pl.BlockSpec((1, tm, N), lambda b, i: (b, i, 0)),              # A row tile (streamed)
            _maybe_single_buffered((1, N, K3), lambda b, i: (b, 0, 0),     # Ys (per-batch const)
                                   single_buffer_constants),
            pl.BlockSpec((1, tm, 2), lambda b, i: (b, i, 0)),              # [d1|d2] rows
            _maybe_single_buffered((K3, F), lambda b, i: (0, 0),           # W (constant)
                                   single_buffer_constants),
        ]
        return pl.pallas_call(
            functools.partial(_agg_kernel, feat=F),
            out_shape=jax.ShapeDtypeStruct((B, N, F), jnp.float32),
            grid_spec=pltpu.PrefetchScalarGridSpec(
                num_scalar_prefetch=0,
                grid=(B, n_tiles),
                in_specs=in_specs,
                out_specs=pl.BlockSpec((1, tm, F), lambda b, i: (b, i, 0))),
            compiler_params=pltpu.CompilerParams(
                dimension_semantics=("parallel", "parallel"),
                vmem_limit_bytes=vmem_limit),
            cost_estimate=p2_cost,
        )(A_stream, ys, dcol, w_pad)

    try:
        out = _run_pass2(True)
    except Exception:
        # pl.Buffered(1) single-buffering not supported on this jax version:
        # fall back to default double-buffered specs (more VMEM, still correct).
        out = _run_pass2(False)

    return A_orig, out


# --------------------------------------------------------------------------------------
# Reference + self-test.
# --------------------------------------------------------------------------------------
def _reference(A, X, w0, w1, w2, w):
    # Exact PyTorch ordering.
    with jax.default_matmul_precision("highest"):
        d = jnp.sum(A, axis=1)
        d1 = (d + _EPS) ** -0.5
        d2 = (d + _EPS) ** -1.0
        A1 = d1[:, :, None] * A * d1[:, None, :]
        A2 = d2[:, :, None] * A
        x0 = jnp.einsum("bij,bjd->bid", A, X) @ w0
        x1 = jnp.einsum("bij,bjd->bid", A1, X) @ w1
        x2 = jnp.einsum("bij,bjd->bid", A2, X) @ w2
        return jnp.concatenate([x0, x1, x2], axis=-1) @ w


if __name__ == "__main__":
    B, N, Din, F = 2, 128, 32, 16

    key = jax.random.PRNGKey(0)
    ka, kx, k0, k1, k2, kw = jax.random.split(key, 6)

    # 0/1 adjacency (bf16-exact) so the degree normalization is well defined.
    A = (jax.random.uniform(ka, (B, N, N)) > 0.7).astype(jnp.float32)
    X = jax.random.normal(kx, (B, N, Din), dtype=jnp.float32)

    def xavier(k, shape):
        bound = (6.0 / (shape[0] + shape[1])) ** 0.5
        return jax.random.uniform(k, shape, jnp.float32, -bound, bound)

    w0 = xavier(k0, (Din, F))
    w1 = xavier(k1, (Din, F))
    w2 = xavier(k2, (Din, F))
    w = xavier(kw, (3 * F, F))

    A_out, out = multi_graph_conv(A, X, w0, w1, w2, w, row_tile=64)  # 2 row tiles / batch
    out = jax.block_until_ready(out)

    ref = _reference(A, X, w0, w1, w2, w)
    assert A_out.shape == A.shape and A_out.dtype == A.dtype
    assert out.shape == (B, N, F)
    max_err = float(jnp.max(jnp.abs(out - ref)))
    assert jnp.allclose(out, ref, atol=5e-4, rtol=5e-4), f"mismatch vs reference: {max_err}"

    print("KERNEL_OK")
</pallas_src>

<mosaic_0001>
module attributes {stable_mosaic.version = 11 : i64} {
  func.func @_degree_kernel(%arg0: i32, %arg1: i32, %arg2: memref<1x64x128xf32, #tpu.memory_space<vmem>>, %arg3: memref<1x2x128xf32, #tpu.memory_space<vmem>>, %arg4: memref<1x64x128xbf16, #tpu.memory_space<vmem>>, %arg5: memref<1x128xf32, #tpu.memory_space<vmem>>) attributes {dimension_semantics = [#tpu.dimension_semantics<parallel>, #tpu.dimension_semantics<arbitrary>], iteration_bounds = array<i64: 2, 2>, scalar_prefetch = 0 : i64, scratch_operands = 1 : i64, tpu.core_type = #tpu.core_type<tc>, window_params = [{transform_indices = @transform_0, window_bounds = array<i64: 1, 64, 128>}, {transform_indices = @transform_1, window_bounds = array<i64: 1, 2, 128>}, {transform_indices = @transform_2, window_bounds = array<i64: 1, 64, 128>}]} {
    %c0_i32 = arith.constant 0 : i32
    %0 = arith.cmpi eq, %arg1, %c0_i32 : i32
    %1 = arith.extui %0 : i1 to i32
    %c0_i32_0 = arith.constant 0 : i32
    %2 = arith.cmpi ne, %1, %c0_i32_0 : i32
    scf.if %2 {
      %cst_14 = arith.constant 0.000000e+00 : f32
      %19 = vector.broadcast %cst_14 : f32 to vector<1x128xf32>
      %c0_15 = arith.constant 0 : index
      %c0_16 = arith.constant 0 : index
      %20 = vector.load %arg5[%c0_15, %c0_16] : memref<1x128xf32, #tpu.memory_space<vmem>>, vector<1x128xf32>
      tpu.vector_store %arg5[%c0_15, %c0_16], %19 {strides = array<i32>} : memref<1x128xf32, #tpu.memory_space<vmem>>, vector<1x128xf32>,
    } else {
    }
    %c0 = arith.constant 0 : index
    %c0_1 = arith.constant 0 : index
    %c0_2 = arith.constant 0 : index
    %3 = vector.load %arg2[%c0, %c0_1, %c0_2] : memref<1x64x128xf32, #tpu.memory_space<vmem>>, vector<1x64x128xf32>
    %4 = vector.shape_cast %3 : vector<1x64x128xf32> to vector<64x128xf32>
    %c0_3 = arith.constant 0 : index
    %c0_4 = arith.constant 0 : index
    %c0_5 = arith.constant 0 : index
    %5 = vector.load %arg2[%c0_3, %c0_4, %c0_5] : memref<1x64x128xf32, #tpu.memory_space<vmem>>, vector<1x64x128xf32>
    %6 = vector.shape_cast %5 : vector<1x64x128xf32> to vector<64x128xf32>
    %7 = arith.truncf %6 : vector<64x128xf32> to vector<64x128xbf16>
    %c0_6 = arith.constant 0 : index
    %c0_7 = arith.constant 0 : index
    %c0_8 = arith.constant 0 : index
    %8 = vector.load %arg4[%c0_6, %c0_7, %c0_8] : memref<1x64x128xbf16, #tpu.memory_space<vmem>>, vector<1x64x128xbf16>
    %9 = vector.shape_cast %8 : vector<1x64x128xbf16> to vector<64x128xbf16>
    %10 = vector.shape_cast %7 : vector<64x128xbf16> to vector<1x64x128xbf16>
    tpu.vector_store %arg4[%c0_6, %c0_7, %c0_8], %10 {strides = array<i32>} : memref<1x64x128xbf16, #tpu.memory_space<vmem>>, vector<1x64x128xbf16>,
    %c0_9 = arith.constant 0 : index
    %c0_10 = arith.constant 0 : index
    %11 = vector.load %arg5[%c0_9, %c0_10] : memref<1x128xf32, #tpu.memory_space<vmem>>, vector<1x128xf32>
    %cst = arith.constant dense<0.000000e+00> : vector<128xf32>
    %12 = vector.multi_reduction <add>, %4, %cst [0] : vector<64x128xf32> to vector<128xf32>
    %13 = vector.shape_cast %12 : vector<128xf32> to vector<1x128xf32>
    %14 = arith.addf %11, %13 : vector<1x128xf32>
    %c0_11 = arith.constant 0 : index
    %c0_12 = arith.constant 0 : index
    %15 = vector.load %arg5[%c0_11, %c0_12] : memref<1x128xf32, #tpu.memory_space<vmem>>, vector<1x128xf32>
    tpu.vector_store %arg5[%c0_11, %c0_12], %14 {strides = array<i32>} : memref<1x128xf32, #tpu.memory_space<vmem>>, vector<1x128xf32>,
    %c1_i32 = arith.constant 1 : i32
    %16 = arith.cmpi eq, %arg1, %c1_i32 : i32
    %17 = arith.extui %16 : i1 to i32
    %c0_i32_13 = arith.constant 0 : i32
    %18 = arith.cmpi ne, %17, %c0_i32_13 : i32
    scf.if %18 {
      %c0_14 = arith.constant 0 : index
      %c0_15 = arith.constant 0 : index
      %19 = vector.load %arg5[%c0_14, %c0_15] : memref<1x128xf32, #tpu.memory_space<vmem>>, vector<1x128xf32>
      %cst_16 = arith.constant 9.99999974E-6 : f32
      %20 = vector.broadcast %cst_16 : f32 to vector<1x128xf32>
      %21 = arith.addf %19, %20 : vector<1x128xf32>
      %22 = math.rsqrt %21 : vector<1x128xf32>
      %cst_17 = arith.constant 1.000000e+00 : f32
      %23 = vector.broadcast %cst_17 : f32 to vector<1x128xf32>
      %24 = arith.divf %23, %21 : vector<1x128xf32>
      %25 = tpu.concatenate %22, %24 in 0 : vector<1x128xf32>, vector<1x128xf32> -> vector<2x128xf32>
      %c0_18 = arith.constant 0 : index
      %c0_19 = arith.constant 0 : index
      %c0_20 = arith.constant 0 : index
      %26 = vector.load %arg3[%c0_18, %c0_19, %c0_20] : memref<1x2x128xf32, #tpu.memory_space<vmem>>, vector<1x2x128xf32>
      %27 = vector.shape_cast %26 : vector<1x2x128xf32> to vector<2x128xf32>
      %28 = vector.shape_cast %25 : vector<2x128xf32> to vector<1x2x128xf32>
      tpu.vector_store %arg3[%c0_18, %c0_19, %c0_20], %28 {strides = array<i32>} : memref<1x2x128xf32, #tpu.memory_space<vmem>>, vector<1x2x128xf32>,
    } else {
    }
    return
  }
  func.func @transform_0(%arg0: i32, %arg1: i32) -> (i32, i32, i32) {
    %c0_i32 = arith.constant 0 : i32
    %c0_i32_0 = arith.constant 0 : i32
    return %arg0, %arg1, %c0_i32 : i32, i32, i32
  }
  func.func @transform_1(%arg0: i32, %arg1: i32) -> (i32, i32, i32) {
    %c0_i32 = arith.constant 0 : i32
    %c0_i32_0 = arith.constant 0 : i32
    %c0_i32_1 = arith.constant 0 : i32
    return %arg0, %c0_i32, %c0_i32_0 : i32, i32, i32
  }
  func.func @transform_2(%arg0: i32, %arg1: i32) -> (i32, i32, i32) {
    %c0_i32 = arith.constant 0 : i32
    %c0_i32_0 = arith.constant 0 : i32
    return %arg0, %arg1, %c0_i32 : i32, i32, i32
  }
}

</mosaic_0001>

<llo_original>
// kernel: tpu_custom_call.1
$region0: #{tpu_custom_call.1}
  #allocation0 [shape = 'u32[]', space=smem, size = 0x4, offset = 0x4, fixed_abs, tag = 'smem constant byte address 0x4 - core index']
  #allocation1 [shape = 'u32[144,128]{1,0:T(1,128)}', space=vmem, size = 0x12000, scoped, tag = 'internal scratch']
  #allocation2 [shape = 'f32[1,128]{1,0:T(1,128)}', space=vmem, size = 0x200, scoped, tag = 'scratch operand']
  %s0 = inlined_call_operand.hbm [shape: f32[2,128,128], index: 0, kind: input, shape index: {}]
  %s1 = inlined_call_operand.hbm [shape: f32[2,2,128], index: 1, kind: output, shape index: {0}]
  %s2 = inlined_call_operand.hbm [shape: bf16[2,128,128], index: 2, kind: output, shape index: {1}]
  %3 = xla_tuple %s1, %s2
  %s4 = sld [smem:[#allocation0]]
  $region57: #{tpu_custom_call.1} parent=0
    _
  %s6 = ssub.s32 1, %s4
  %s7 = scalar_select 0, %s6, %s4
  $region1: #{tpu_custom_call.1} parent=0
    #allocation3 [shape = 'u8[65536]{0}', space=vmem, size = 0x10000, scoped, tag = 'input window, operand 0']
    #allocation4 [shape = 's32[2]{0}', space=sflag, size = 0x8, scoped, tag = 'scoped memory for tpu_custom_call.1']
    #allocation5 [shape = 's32[2]{0}', space=sflag, size = 0x8, scoped, tag = 'scoped memory for tpu_custom_call.1']
    #allocation6 [shape = 'u8[2048]{0}', space=vmem, size = 0x800, scoped, tag = 'output window, operand 0']
    #allocation7 [shape = 'u8[32768]{0}', space=vmem, size = 0x8000, scoped, tag = 'output window, operand 1']
    #allocation8 [shape = 's32[2]{0}', space=sflag, size = 0x8, scoped, tag = 'scoped memory for tpu_custom_call.1']
    %8 = vsyncpa [#allocation4], 0
    %s9 = scalar_lea.sflag [#allocation4], 1
    %10 = vsyncpa %s9, 0
    %11 = vsyncpa [#allocation5], 0
    %s12 = scalar_lea.sflag [#allocation5], 1
    %13 = vsyncpa %s12, 0
    %14 = vsyncpa [#allocation8], 0
    %s15 = scalar_lea.sflag [#allocation8], 1
    %16 = vsyncpa %s15, 0
    loop: start=0, step=1, limit=6
    $region2: #{tpu_custom_call.1} parent=1 // loop_pre_header
      _
    $region3: #{tpu_custom_call.1} parent=1 // loop_header
      %s18 = sphi 0, %s22
      %p19 = scmp.ge.s32.totalorder %s18, 6
      %s25 = sphi 0, %s37
      %s26 = sphi 0, %s33
      %s27 = sphi 0, %s25
      %s28 = sphi 0, %s26
      %s29 = sphi 0, %s27
      %s30 = sphi 0, %s28
      %s42 = sphi 0, %s44
      %s45 = sphi 0, %s42
      %s46 = sphi 0, %s45
      %s62 = sphi 0, %s46
      %s68 = sphi 0, %s70
      %s71 = sphi 0, %s68
      %s72 = sphi 0, %s71
      %s88 = sphi 0, %s72
      %s96 = sphi 0, %s98
      %s99 = sphi 0, %s96
      %s100 = sphi 0, %s99
      %s116 = sphi 0, %s100
    $region4: #{tpu_custom_call.1} parent=1 // loop_header_branch
      %21 = sbr.rel (%p19) target = $region8
    $region5: #{tpu_custom_call.1} parent=1 // loop_body
      %s23 = ssub.s32 %s18, 1
      %s24 = ssub.s32 %s18, 2
      %s31 = sadd.s32 1, %s26
      %p32 = scmp.ge.s32.totalorder %s31, 2
      %s33 = scalar_select %p32, 0, %s31
      %s34 = sadd.s32 1, %s25
      %s35 = scalar_select %p32, %s34, %s25
      %p36 = scmp.ge.s32.totalorder %s35, 2
      %s37 = scalar_select %p36, 0, %s35
      %s38 = ssub.s32 %s25, %s37
      %s39 = ssub.s32 %s26, %s33
      %s40 = sor.u32 %s38, %s39
      %p41 = scmp.eq.s32.totalorder %s40, 0
      %s43 = sadd.s32 %s42, 1
      %s44 = scalar_select %p41, %s42, %s43
      %p47 = pneg %p41
      %p48 = scmp.eq.s32.totalorder %s18, 3
      %p49 = por %p47, %p48
      %p50 = scmp.ne.s32.totalorder %s42, %s45
      %p51 = scmp.eq.s32.totalorder %s18, 0
      %p52 = por %p50, %p51
      %p53 = scmp.ne.s32.totalorder %s42, %s45
      %p54 = scmp.eq.s32.totalorder %s23, 3
      %p55 = por %p53, %p54
      %p56 = scmp.ne.s32.totalorder %s45, %s46
      %p57 = scmp.eq.s32.totalorder %s23, 0
      %p58 = por %p56, %p57
      %p59 = scmp.ne.s32.totalorder %s45, %s46
      %p60 = scmp.eq.s32.totalorder %s24, 3
      %p61 = por %p59, %p60
      %p63 = scmp.ne.s32.totalorder %s46, %s62
      %p64 = scmp.eq.s32.totalorder %s24, 0
      %p65 = por %p63, %p64
      %s66 = ssub.s32 %s25, %s37
      %p67 = scmp.eq.s32.totalorder %s66, 0
      %s69 = sadd.s32 %s68, 1
      %s70 = scalar_select %p67, %s68, %s69
      %p73 = pneg %p67
      %p74 = scmp.eq.s32.totalorder %s18, 3
      %p75 = por %p73, %p74
      %p76 = scmp.ne.s32.totalorder %s68, %s71
      %p77 = scmp.eq.s32.totalorder %s18, 0
      %p78 = por %p76, %p77
      %p79 = scmp.ne.s32.totalorder %s68, %s71
      %p80 = scmp.eq.s32.totalorder %s23, 3
      %p81 = por %p79, %p80
      %p82 = scmp.ne.s32.totalorder %s71, %s72
      %p83 = scmp.eq.s32.totalorder %s23, 0
      %p84 = por %p82, %p83
      %p85 = scmp.ne.s32.totalorder %s71, %s72
      %p86 = scmp.eq.s32.totalorder %s24, 3
      %p87 = por %p85, %p86
      %p89 = scmp.ne.s32.totalorder %s72, %s88
      %p90 = scmp.eq.s32.totalorder %s24, 0
      %p91 = por %p89, %p90
      %s92 = ssub.s32 %s25, %s37
      %s93 = ssub.s32 %s26, %s33
      %s94 = sor.u32 %s92, %s93
      %p95 = scmp.eq.s32.totalorder %s94, 0
      %s97 = sadd.s32 %s96, 1
      %s98 = scalar_select %p95, %s96, %s97
      %p101 = pneg %p95
      %p102 = scmp.eq.s32.totalorder %s18, 3
      %p103 = por %p101, %p102
      %p104 = scmp.ne.s32.totalorder %s96, %s99
      %p105 = scmp.eq.s32.totalorder %s18, 0
      %p106 = por %p104, %p105
      %p107 = scmp.ne.s32.totalorder %s96, %s99
      %p108 = scmp.eq.s32.totalorder %s23, 3
      %p109 = por %p107, %p108
      %p110 = scmp.ne.s32.totalorder %s99, %s100
      %p111 = scmp.eq.s32.totalorder %s23, 0
      %p112 = por %p110, %p111
      %p113 = scmp.ne.s32.totalorder %s99, %s100
      %p114 = scmp.eq.s32.totalorder %s24, 3
      %p115 = por %p113, %p114
      %p117 = scmp.ne.s32.totalorder %s100, %s116
      %p118 = scmp.eq.s32.totalorder %s24, 0
      %p119 = por %p117, %p118
      %p120 = scmp.le.s32.totalorder 1, %s18
      %p121 = scmp.lt.s32.totalorder %s18, 5
      %p122 = pnand %p120, %p121
      %p123 = pneg %p122
      // Predicated region
      $region9: #{tpu_custom_call.1} parent=5 // pred_check
        _
      $region10: #{tpu_custom_call.1} parent=5 // pred_check_branch
        %125 = sbr.rel (%p122) target = $region12
      $region11: #{tpu_custom_call.1} parent=5 // pred_region
        %s126 = ssub.s32 %s18, 1
      $region12: #{tpu_custom_call.1} parent=5 // pred_fallthru
        _
      %p127 = scmp.lt.s32.totalorder %s18, 4
      // Predicated region
      $region13: #{tpu_custom_call.1} parent=5 // pred_check
        %p128 = pneg %p127
      $region14: #{tpu_custom_call.1} parent=5 // pred_check_branch
        %130 = sbr.rel (%p128) target = $region16
      $region15: #{tpu_custom_call.1} parent=5 // pred_region
        // Predicated region
        $region17: #{tpu_custom_call.1} parent=15 // pred_check
          %p131 = pneg %p52
        $region18: #{tpu_custom_call.1} parent=15 // pred_check_branch
          %133 = sbr.rel (%p131) target = $region20
        $region19: #{tpu_custom_call.1} parent=15 // pred_region
          %s134 = sand.u32 %s42, 1
          %s135 = scalar_lea.sflag [#allocation4], %s134
          %s136 = sand.u32 %s42, 1
          %s137 = smul.addr %s136, 64
          %s138 = scalar_lea.vmem [#allocation3], %s137
          %s139 = smul.u32 8, %s26
          %s141 = ssub.s32 1024, 1024
          %142 = vsyncadd %s135, %s141
          %s143 = smul.addr %s25, 16
          %s144 = sadd.s32 %s139, %s143
          %s145 = smul.addr %s144, 128
          %s146 = scalar_lea.hbm %s0, %s145
          %s147 = sshll.u32 %s138, 4
          %s148 = int_to_ptr.vmem [resolvable:$true] %s147
          %153 = dma.hbm_to_vmem [thread:$0]  %s146, 1024, %s148, %s135, 128, 128, 8
        $region20: #{tpu_custom_call.1} parent=15 // pred_fallthru
          _
      $region16: #{tpu_custom_call.1} parent=5 // pred_fallthru
        _
      %p154 = scmp.le.s32.totalorder 1, %s18
      %p155 = scmp.lt.s32.totalorder %s18, 5
      %p156 = pnand %p154, %p155
      %p157 = pneg %p156
      // Predicated region
      $region21: #{tpu_custom_call.1} parent=5 // pred_check
        _
      $region22: #{tpu_custom_call.1} parent=5 // pred_check_branch
        %159 = sbr.rel (%p156) target = $region24
      $region23: #{tpu_custom_call.1} parent=5 // pred_region
        %s160 = ssub.s32 %s18, 1
        %s161 = sand.u32 %s45, 1
        %s162 = scalar_lea.sflag [#allocation4], %s161
        %s163 = sand.u32 %s45, 1
        %s164 = smul.addr %s163, 64
        %s165 = scalar_lea.vmem [#allocation3], %s164
        // Predicated region
        $region25: #{tpu_custom_call.1} parent=23 // pred_check
          %p166 = pneg %p58
        $region26: #{tpu_custom_call.1} parent=23 // pred_check_branch
          %168 = sbr.rel (%p166) target = $region28
        $region27: #{tpu_custom_call.1} parent=23 // pred_region
          %169 = dma.done %s162, 1024
        $region28: #{tpu_custom_call.1} parent=23 // pred_fallthru
          _
        %s170 = sand.u32 %s45, 1
        %s171 = scalar_lea.sflag [#allocation4], %s170
        %s172 = sand.u32 %s45, 1
        %s173 = smul.addr %s172, 64
        %s174 = scalar_lea.vmem [#allocation3], %s173
        %p175 = pneg %p58
        %p176 = pneg %p55
        %p177 = pneg %p84
        %p178 = pneg %p81
        %s179 = sand.u32 %s71, 1
        %s180 = scalar_lea.sflag [#allocation5], %s179
        %s181 = sand.u32 %s71, 1
        %s182 = smul.addr %s181, 2
        %s183 = scalar_lea.vmem [#allocation6], %s182
        %p184 = pneg %p112
        %p185 = pneg %p109
        %s186 = sand.u32 %s99, 1
        %s187 = scalar_lea.sflag [#allocation8], %s186
        %s188 = sand.u32 %s99, 1
        %s189 = smul.addr %s188, 32
        %s190 = scalar_lea.vmem [#allocation7], %s189
        %s191 = smul.u32 8, %s28
        %s192 = smul.u32 8, %s28
        %p193 = scmp.eq.s32.totalorder %s28, 0
        // Predicated region
        $region29: #{tpu_custom_call.1} parent=23 // pred_check
          %p194 = pneg %p193
        $region30: #{tpu_custom_call.1} parent=23 // pred_check_branch
          %196 = sbr.rel (%p194) target = $region32
        $region31: #{tpu_custom_call.1} parent=23 // pred_region
          %197 = vst [vmem:[#allocation2] sm:$0x1] 0.0
        $region32: #{tpu_custom_call.1} parent=23 // pred_fallthru
          _
        %v198 = vld [vmem:[%s165] sm:$0xff]
        %v199 = vld [vmem:[%s165 + $0x8] sm:$0xff]
        %v200 = vld [vmem:[%s165 + $0x10] sm:$0xff]
        %v201 = vld [vmem:[%s165 + $0x18] sm:$0xff]
        %v202 = vld [vmem:[%s165 + $0x20] sm:$0xff]
        %v203 = vld [vmem:[%s165 + $0x28] sm:$0xff]
        %v204 = vld [vmem:[%s165 + $0x30] sm:$0xff]
        %v205 = vld [vmem:[%s165 + $0x38] sm:$0xff]
        %v206 = vpack.c.bf16 %v199, %v198
        %v207 = vpack.c.bf16 %v201, %v200
        %v208 = vpack.c.bf16 %v203, %v202
        %v209 = vpack.c.bf16 %v205, %v204
        %v214 = vunpack.c.l.b16 %v206
        %v215 = vunpack.c.h.b16 %v206
        %v216 = vunpack.c.l.b16 %v207
        %v217 = vunpack.c.h.b16 %v207
        %v218 = vunpack.c.l.b16 %v208
        %v219 = vunpack.c.h.b16 %v208
        %v220 = vunpack.c.l.b16 %v209
        %v221 = vunpack.c.h.b16 %v209
        %v222 = vpack.c.b16 %v214, %v214
        %v223 = vpack.c.b16 %v215, %v215
        %v224 = vpack.c.b16 %v216, %v216
        %v225 = vpack.c.b16 %v217, %v217
        %v226 = vpack.c.b16 %v218, %v218
        %v227 = vpack.c.b16 %v219, %v219
        %v228 = vpack.c.b16 %v220, %v220
        %v229 = vpack.c.b16 %v221, %v221
        %238 = vst [vmem:[%s190] sm:$0xf] %v222
        %239 = vst [vmem:[%s190 + $0x4] sm:$0xf] %v223
        %240 = vst [vmem:[%s190 + $0x8] sm:$0xf] %v224
        %241 = vst [vmem:[%s190 + $0xc] sm:$0xf] %v225
        %242 = vst [vmem:[%s190 + $0x10] sm:$0xf] %v226
        %243 = vst [vmem:[%s190 + $0x14] sm:$0xf] %v227
        %244 = vst [vmem:[%s190 + $0x18] sm:$0xf] %v228
        %245 = vst [vmem:[%s190 + $0x1c] sm:$0xf] %v229
        %v246 = vld [vmem:[#allocation2] sm:$0x1]
        %v247 = vadd.f32 %v198, %v199
        %v248 = vadd.f32 %v247, %v200
        %v249 = vadd.f32 %v248, %v201
        %v250 = vadd.f32 %v249, %v202
        %v251 = vadd.f32 %v250, %v203
        %v252 = vadd.f32 %v251, %v204
        %v253 = vadd.f32 %v252, %v205
        %v254 = vrot.slane %v253, 4
        %v255 = vadd.f32 %v253, %v254
        %v256 = vrot.slane %v255, 2
        %v257 = vadd.f32 %v255, %v256
        %v258 = vrot.slane %v257, 1
        %v259 = vadd.f32 %v257, %v258
        %v260 = vadd.f32 %v246, %v259
        %261 = vst [vmem:[#allocation2] sm:$0x1] %v260
        %p262 = scmp.eq.s32.totalorder %s28, 1
        // Predicated region
        $region33: #{tpu_custom_call.1} parent=23 // pred_check
          %p263 = pneg %p262
        $region34: #{tpu_custom_call.1} parent=23 // pred_check_branch
          %265 = sbr.rel (%p263) target = $region36
        $region35: #{tpu_custom_call.1} parent=23 // pred_region
          %v266 = vld [vmem:[#allocation2] sm:$0x1]
          %v267 = vadd.f32 %v266, 1e-05
          %v268 = vrsqrt.pop %v267
          %v269 = vrcp.pop %v267
          %v270 = vmul.f32 1.0, %v269
          %v272 = vlaneseq
          %v273 = vshrl.u32 %v272, 7
          %v274 = vsub.s32 0, %v273
          %v275 = vrot.slane %v270, %v274
          %vm277 = vcmask 1040384
          %v278 = vsel %vm277, %v268, %v275
          %279 = vst [vmem:[%s183] sm:$0x3] %v278
        $region36: #{tpu_custom_call.1} parent=23 // pred_fallthru
          _
        %s280 = sand.u32 %s71, 1
        %s281 = scalar_lea.sflag [#allocation5], %s280
        %s282 = sand.u32 %s71, 1
        %s283 = smul.addr %s282, 2
        %s284 = scalar_lea.vmem [#allocation6], %s283
        %s285 = sand.u32 %s99, 1
        %s286 = scalar_lea.sflag [#allocation8], %s285
        %s287 = sand.u32 %s99, 1
        %s288 = smul.addr %s287, 32
        %s289 = scalar_lea.vmem [#allocation7], %s288
        // Predicated region
        $region37: #{tpu_custom_call.1} parent=23 // pred_check
          %p290 = pneg %p81
        $region38: #{tpu_custom_call.1} parent=23 // pred_check_branch
          %292 = sbr.rel (%p290) target = $region40
        $region39: #{tpu_custom_call.1} parent=23 // pred_region
          %s294 = ssub.s32 32, 32
          %295 = vsyncadd %s281, %s294
          %s296 = smul.addr %s27, 32
          %s297 = scalar_lea.hbm %s1, %s296
          %s299 = sshll.u32 %s284, 4
          %s300 = int_to_ptr.vmem [resolvable:$true] %s299
          %302 = dma.vmem_to_hbm [thread:$0]  %s300, 32, %s297, %s281
        $region40: #{tpu_custom_call.1} parent=23 // pred_fallthru
          _
        // Predicated region
        $region41: #{tpu_custom_call.1} parent=23 // pred_check
          %p303 = pneg %p109
        $region42: #{tpu_custom_call.1} parent=23 // pred_check_branch
          %305 = sbr.rel (%p303) target = $region44
        $region43: #{tpu_custom_call.1} parent=23 // pred_region
          %s306 = smul.u32 8, %s28
          %s308 = ssub.s32 512, 512
          %309 = vsyncadd %s286, %s308
          %s310 = smul.addr %s27, 16
          %s311 = sadd.s32 %s306, %s310
          %s312 = smul.addr %s311, 64
          %s313 = scalar_lea.hbm %s2, %s312
          %s314 = sshll.u32 %s289, 4
          %s315 = int_to_ptr.vmem [resolvable:$true] %s314
          %320 = dma.vmem_to_hbm [thread:$0]  %s315, 512, %s313, %s286, 64, 64, 4
        $region44: #{tpu_custom_call.1} parent=23 // pred_fallthru
          _
      $region24: #{tpu_custom_call.1} parent=5 // pred_fallthru
        _
      %p321 = scmp.le.s32.totalorder 2, %s18
      // Predicated region
      $region45: #{tpu_custom_call.1} parent=5 // pred_check
        %p322 = pneg %p321
      $region46: #{tpu_custom_call.1} parent=5 // pred_check_branch
        %324 = sbr.rel (%p322) target = $region48
      $region47: #{tpu_custom_call.1} parent=5 // pred_region
        %s325 = ssub.s32 %s18, 2
        // Predicated region
        $region49: #{tpu_custom_call.1} parent=47 // pred_check
          %p326 = pneg %p87
        $region50: #{tpu_custom_call.1} parent=47 // pred_check_branch
          %328 = sbr.rel (%p326) target = $region52
        $region51: #{tpu_custom_call.1} parent=47 // pred_region
          %s329 = sand.u32 %s72, 1
          %s330 = scalar_lea.sflag [#allocation5], %s329
          %s331 = sand.u32 %s72, 1
          %s332 = smul.addr %s331, 2
          %s333 = scalar_lea.vmem [#allocation6], %s332
          %334 = dma.done %s330, 32
        $region52: #{tpu_custom_call.1} parent=47 // pred_fallthru
          _
        // Predicated region
        $region53: #{tpu_custom_call.1} parent=47 // pred_check
          %p335 = pneg %p115
        $region54: #{tpu_custom_call.1} parent=47 // pred_check_branch
          %337 = sbr.rel (%p335) target = $region56
        $region55: #{tpu_custom_call.1} parent=47 // pred_region
          %s338 = sand.u32 %s100, 1
          %s339 = scalar_lea.sflag [#allocation8], %s338
          %s340 = sand.u32 %s100, 1
          %s341 = smul.addr %s340, 32
          %s342 = scalar_lea.vmem [#allocation7], %s341
          %343 = dma.done %s339, 512
        $region56: #{tpu_custom_call.1} parent=47 // pred_fallthru
          _
      $region48: #{tpu_custom_call.1} parent=5 // pred_fallthru
        _
    $region6: #{tpu_custom_call.1} parent=1 // loop_footer
      %s22 = sadd.s32 1, %s18
    $region7: #{tpu_custom_call.1} parent=1 // loop_footer_branch
      %17 = sbr.rel target = $region3
    $region8: #{tpu_custom_call.1} parent=1 // loop_exit
      _
    %344 = vsyncpa [#allocation4], 1
    %s345 = scalar_lea.sflag [#allocation4], 1
    %346 = vsyncpa %s345, 1
    %347 = vsyncpa [#allocation5], 1
    %s348 = scalar_lea.sflag [#allocation5], 1
    %349 = vsyncpa %s348, 1
    %350 = vsyncpa [#allocation8], 1
    %s351 = scalar_lea.sflag [#allocation8], 1
    %352 = vsyncpa %s351, 1

</llo_original>
